<compile_context>
chip_gen: v6e
topology: v6e:2x2x1
jax: 0.10.0
libtpu: 0.0.40
codegen_flags: <defaults>
</compile_context>

<pallas_src>
import functools

import jax
import jax.numpy as jnp
from jax.experimental import pallas as pl
from jax.experimental.pallas import tpu as pltpu


def _round_up(x, m):
    return ((x + m - 1) // m) * m


def _actor_critic_kernel(x_ref, w1_ref, b1_ref, w2_ref, b2_ref, out_ref, *,
                         num_actions):
    # x arrives as f32; cast to bf16 in-kernel for the MXU (hidden VPU work).
    x = x_ref[...].astype(jnp.bfloat16)

    # ---- fused layer 1 (actor || critic): [TB,S] @ [S,2H] -> [TB,2H] ----
    h = jnp.dot(x, w1_ref[...],
                preferred_element_type=jnp.float32) + b1_ref[...]
    h = jnp.maximum(h, 0.0)

    # ---- fused layer 2 (block-diagonal): [TB,2H] @ [2H,OUT_W] -> [TB,OUT_W] ----
    out2 = jnp.dot(h.astype(w2_ref.dtype), w2_ref[...],
                   preferred_element_type=jnp.float32) + b2_ref[...]

    # ---- softmax over lanes [0, num_actions); critic value in lane num_actions ----
    col = jax.lax.broadcasted_iota(jnp.int32, out2.shape, dimension=1)
    is_action = col < num_actions
    m = jnp.max(jnp.where(is_action, out2, jnp.float32(-1e30)),
                axis=-1, keepdims=True)
    e = jnp.where(is_action, jnp.exp(out2 - m), 0.0)
    denom = jnp.sum(e, axis=-1, keepdims=True)
    probs = e / denom  # exact normalization: sums to 1 in f32

    # Lane-dense output slab: probs in lanes [0,A), value at lane A, zeros above.
    out_ref[...] = jnp.where(col == num_actions, out2, probs).astype(out_ref.dtype)


def fuse_params(params):
    """Concatenate actor/critic weights once (outside the kernel); weights bf16."""
    hid = params["wa1"].shape[1]
    num_actions = params["wa2"].shape[1]
    out_w = _round_up(num_actions + 1, 128)

    w1 = jnp.concatenate([params["wa1"], params["wc1"]], axis=1)      # [S, 2H]
    b1 = jnp.concatenate([params["ba1"], params["bc1"]], axis=1)      # [1, 2H]

    w2 = jnp.zeros((2 * hid, out_w), jnp.float32)                     # block-diagonal
    w2 = w2.at[:hid, :num_actions].set(params["wa2"])
    w2 = w2.at[hid:, num_actions:num_actions + 1].set(params["wc2"])
    b2 = jnp.zeros((1, out_w), jnp.float32)
    b2 = b2.at[:, :num_actions].set(params["ba2"][0])
    b2 = b2.at[:, num_actions:num_actions + 1].set(params["bc2"][0])

    return dict(w1=w1.astype(jnp.bfloat16), b1=b1,
                w2=w2.astype(jnp.bfloat16), b2=b2,
                hid=hid, num_actions=num_actions, out_w=out_w)


def actor_critic_forward(x, fused, *, batch_tile=1024):
    """x: [B, state_dim] float32. fused: output of fuse_params()."""
    B, state_dim = x.shape
    hid = fused["hid"]
    num_actions = fused["num_actions"]
    out_w = fused["out_w"]

    # Batch tiling: >=2 grid steps when B > 16 (so v7x megacore shards the
    # batch over both TensorCores); tiles are multiples of 16 sublanes (bf16);
    # large tiles amortize the ~0.35us per-step pipeline overhead.
    if B <= 16:
        tb = 16
    else:
        tb = min(batch_tile, _round_up(pl.cdiv(B, 2), 16))
    b_pad = _round_up(B, tb)
    xp = x if b_pad == B else jnp.pad(x, ((0, b_pad - B), (0, 0)))
    grid = (b_pad // tb,)

    flops = 2 * b_pad * (state_dim * 2 * hid + 2 * hid * out_w)
    bytes_accessed = (b_pad * state_dim * 4                     # x (f32)
                      + fused["w1"].size * 2 + fused["w2"].size * 2
                      + (fused["b1"].size + fused["b2"].size) * 4
                      + b_pad * out_w * 2)                       # out (bf16)

    out = pl.pallas_call(
        functools.partial(_actor_critic_kernel, num_actions=num_actions),
        out_shape=jax.ShapeDtypeStruct((b_pad, out_w), jnp.bfloat16),
        grid=grid,
        in_specs=[
            pl.BlockSpec((tb, state_dim), lambda i: (i, 0)),       # x tile (f32)
            pl.BlockSpec((state_dim, 2 * hid), lambda i: (0, 0)),  # W1 resident
            pl.BlockSpec((1, 2 * hid), lambda i: (0, 0)),          # b1 resident
            pl.BlockSpec((2 * hid, out_w), lambda i: (0, 0)),      # W2 resident
            pl.BlockSpec((1, out_w), lambda i: (0, 0)),            # b2 resident
        ],
        out_specs=pl.BlockSpec((tb, out_w), lambda i: (i, 0)),
        compiler_params=pltpu.CompilerParams(
            dimension_semantics=("parallel",)),
        cost_estimate=pl.CostEstimate(
            flops=flops,
            transcendentals=b_pad * out_w,
            bytes_accessed=bytes_accessed),
    )(xp, fused["w1"], fused["b1"], fused["w2"], fused["b2"])

    critic_val = out[:B, num_actions:num_actions + 1].astype(jnp.float32)
    action_probs = out[:B, :num_actions].astype(jnp.float32)
    return critic_val, action_probs


def init_params(key, state_dim, num_actions, hid_dim=128):
    """Deterministic PyTorch-style (uniform +-1/sqrt(fan_in)) initialization."""
    def linear(k, fan_in, fan_out):
        kw, kb = jax.random.split(k)
        bound = 1.0 / jnp.sqrt(fan_in)
        w = jax.random.uniform(kw, (fan_in, fan_out), jnp.float32, -bound, bound)
        b = jax.random.uniform(kb, (1, fan_out), jnp.float32, -bound, bound)
        return w, b

    k1, k2, k3, k4 = jax.random.split(key, 4)
    wa1, ba1 = linear(k1, state_dim, hid_dim)
    wa2, ba2 = linear(k2, hid_dim, num_actions)
    wc1, bc1 = linear(k3, state_dim, hid_dim)
    wc2, bc2 = linear(k4, hid_dim, 1)
    return dict(wa1=wa1, ba1=ba1, wa2=wa2, ba2=ba2,
                wc1=wc1, bc1=bc1, wc2=wc2, bc2=bc2)


def _reference(x, p):
    h_a = jnp.maximum(x @ p["wa1"] + p["ba1"], 0.0)
    logits = h_a @ p["wa2"] + p["ba2"]
    probs = jax.nn.softmax(logits, axis=-1)
    h_c = jnp.maximum(x @ p["wc1"] + p["bc1"], 0.0)
    v = h_c @ p["wc2"] + p["bc2"]
    return v, probs


if __name__ == "__main__":
    key = jax.random.PRNGKey(0)
    kx, kp = jax.random.split(key)

    batch, state_dim, num_actions, hid_dim = 8, 16, 8, 128
    x = jax.random.normal(kx, (batch, state_dim), jnp.float32)
    params = init_params(kp, state_dim, num_actions, hid_dim)
    fused = fuse_params(params)

    critic_val, action_probs = actor_critic_forward(x, fused)
    jax.block_until_ready((critic_val, action_probs))

    # Reference in f32 (kernel uses bf16 MXU inputs + bf16 output slab ->
    # loosened tolerances: ~2^-8 relative from bf16 rounding).
    v_ref, p_ref = _reference(x, params)
    assert critic_val.shape == (batch, 1)
    assert action_probs.shape == (batch, num_actions)
    assert jnp.allclose(critic_val, v_ref, atol=2e-2, rtol=2e-2), \
        jnp.max(jnp.abs(critic_val - v_ref))
    assert jnp.allclose(action_probs, p_ref, atol=2e-2, rtol=2e-2), \
        jnp.max(jnp.abs(action_probs - p_ref))
    assert jnp.all(action_probs >= 0.0)
    # Probs are exactly normalized in f32 inside the kernel; the only residual
    # error here is the bf16 rounding of the stored probabilities (<= 2^-8).
    assert jnp.allclose(jnp.sum(action_probs, axis=-1), 1.0, atol=8e-3), \
        jnp.max(jnp.abs(jnp.sum(action_probs, axis=-1) - 1.0))

    print("KERNEL_OK")
</pallas_src>

<mosaic_0001>
module attributes {stable_mosaic.version = 11 : i64} {
  func.func @_actor_critic_kernel(%arg0: i32, %arg1: memref<16x16xf32, #tpu.memory_space<vmem>>, %arg2: memref<16x256xbf16, #tpu.memory_space<vmem>>, %arg3: memref<1x256xf32, #tpu.memory_space<vmem>>, %arg4: memref<256x128xbf16, #tpu.memory_space<vmem>>, %arg5: memref<1x128xf32, #tpu.memory_space<vmem>>, %arg6: memref<16x128xbf16, #tpu.memory_space<vmem>>) attributes {dimension_semantics = [#tpu.dimension_semantics<parallel>], iteration_bounds = array<i64: 1>, scalar_prefetch = 0 : i64, scratch_operands = 0 : i64, tpu.core_type = #tpu.core_type<tc>, window_params = [{transform_indices = @transform_0, window_bounds = array<i64: 16, 16>}, {pipeline_mode = #tpu.pipeline_mode<synchronous>, transform_indices = @transform_1, window_bounds = array<i64: 16, 256>}, {pipeline_mode = #tpu.pipeline_mode<synchronous>, transform_indices = @transform_2, window_bounds = array<i64: 1, 256>}, {pipeline_mode = #tpu.pipeline_mode<synchronous>, transform_indices = @transform_3, window_bounds = array<i64: 256, 128>}, {pipeline_mode = #tpu.pipeline_mode<synchronous>, transform_indices = @transform_4, window_bounds = array<i64: 1, 128>}, {transform_indices = @transform_5, window_bounds = array<i64: 16, 128>}]} {
    %c0 = arith.constant 0 : index
    %c0_0 = arith.constant 0 : index
    %0 = vector.load %arg1[%c0, %c0_0] : memref<16x16xf32, #tpu.memory_space<vmem>>, vector<16x16xf32>
    %1 = arith.truncf %0 : vector<16x16xf32> to vector<16x16xbf16>
    %c0_1 = arith.constant 0 : index
    %c0_2 = arith.constant 0 : index
    %2 = vector.load %arg2[%c0_1, %c0_2] : memref<16x256xbf16, #tpu.memory_space<vmem>>, vector<16x256xbf16>
    %cst = arith.constant dense<0.000000e+00> : vector<16x256xf32>
    %3 = tpu.matmul %1, %2, %cst {dimension_numbers = #tpu.dot_dimension_numbers<[1], [0], [0], [1], [0, 0, 1, 1], [], []>} : vector<16x16xbf16>, vector<16x256xbf16>, vector<16x256xf32> -> vector<16x256xf32>
    %c0_3 = arith.constant 0 : index
    %c0_4 = arith.constant 0 : index
    %4 = vector.load %arg3[%c0_3, %c0_4] : memref<1x256xf32, #tpu.memory_space<vmem>>, vector<1x256xf32>
    %5 = vector.broadcast %4 : vector<1x256xf32> to vector<16x256xf32>
    %6 = arith.addf %3, %5 : vector<16x256xf32>
    %cst_5 = arith.constant 0.000000e+00 : f32
    %7 = vector.broadcast %cst_5 : f32 to vector<16x256xf32>
    %8 = arith.maximumf %6, %7 : vector<16x256xf32>
    %9 = arith.truncf %8 : vector<16x256xf32> to vector<16x256xbf16>
    %c0_6 = arith.constant 0 : index
    %c0_7 = arith.constant 0 : index
    %10 = vector.load %arg4[%c0_6, %c0_7] : memref<256x128xbf16, #tpu.memory_space<vmem>>, vector<256x128xbf16>
    %cst_8 = arith.constant dense<0.000000e+00> : vector<16x128xf32>
    %11 = tpu.matmul %9, %10, %cst_8 {dimension_numbers = #tpu.dot_dimension_numbers<[1], [0], [0], [1], [0, 0, 1, 1], [], []>} : vector<16x256xbf16>, vector<256x128xbf16>, vector<16x128xf32> -> vector<16x128xf32>
    %c0_9 = arith.constant 0 : index
    %c0_10 = arith.constant 0 : index
    %12 = vector.load %arg5[%c0_9, %c0_10] : memref<1x128xf32, #tpu.memory_space<vmem>>, vector<1x128xf32>
    %13 = vector.broadcast %12 : vector<1x128xf32> to vector<16x128xf32>
    %14 = arith.addf %11, %13 : vector<16x128xf32>
    %15 = tpu.iota {dimensions = array<i32: 1>} : vector<16x128xi32>
    %c8_i32 = arith.constant 8 : i32
    %16 = vector.broadcast %c8_i32 : i32 to vector<16x128xi32>
    %17 = arith.cmpi slt, %15, %16 : vector<16x128xi32>
    %cst_11 = arith.constant -1.000000e+30 : f32
    %18 = vector.broadcast %cst_11 : f32 to vector<16x128xf32>
    %19 = arith.select %17, %14, %18 : vector<16x128xi1>, vector<16x128xf32>
    %cst_12 = arith.constant dense<0xFF800000> : vector<16xf32>
    %20 = vector.multi_reduction <maximumf>, %19, %cst_12 [1] : vector<16x128xf32> to vector<16xf32>
    %21 = vector.shape_cast %20 : vector<16xf32> to vector<16x1xf32>
    %22 = vector.broadcast %21 : vector<16x1xf32> to vector<16x128xf32>
    %23 = arith.subf %14, %22 : vector<16x128xf32>
    %24 = math.exp %23 : vector<16x128xf32>
    %cst_13 = arith.constant 0.000000e+00 : f32
    %25 = vector.broadcast %cst_13 : f32 to vector<16x128xf32>
    %26 = arith.select %17, %24, %25 : vector<16x128xi1>, vector<16x128xf32>
    %cst_14 = arith.constant dense<0.000000e+00> : vector<16xf32>
    %27 = vector.multi_reduction <add>, %26, %cst_14 [1] : vector<16x128xf32> to vector<16xf32>
    %28 = vector.shape_cast %27 : vector<16xf32> to vector<16x1xf32>
    %29 = vector.broadcast %28 : vector<16x1xf32> to vector<16x128xf32>
    %30 = arith.divf %26, %29 : vector<16x128xf32>
    %c8_i32_15 = arith.constant 8 : i32
    %31 = vector.broadcast %c8_i32_15 : i32 to vector<16x128xi32>
    %32 = arith.cmpi eq, %15, %31 : vector<16x128xi32>
    %33 = arith.select %32, %14, %30 : vector<16x128xi1>, vector<16x128xf32>
    %34 = arith.truncf %33 : vector<16x128xf32> to vector<16x128xbf16>
    %c0_16 = arith.constant 0 : index
    %c0_17 = arith.constant 0 : index
    %35 = vector.load %arg6[%c0_16, %c0_17] : memref<16x128xbf16, #tpu.memory_space<vmem>>, vector<16x128xbf16>
    tpu.vector_store %arg6[%c0_16, %c0_17], %34 {strides = array<i32>} : memref<16x128xbf16, #tpu.memory_space<vmem>>, vector<16x128xbf16>,
    return
  }
  func.func @transform_0(%arg0: i32) -> (i32, i32) {
    %c0_i32 = arith.constant 0 : i32
    %c0_i32_0 = arith.constant 0 : i32
    return %arg0, %c0_i32 : i32, i32
  }
  func.func @transform_1(%arg0: i32) -> (i32, i32) {
    %c0_i32 = arith.constant 0 : i32
    %c0_i32_0 = arith.constant 0 : i32
    %c0_i32_1 = arith.constant 0 : i32
    return %c0_i32, %c0_i32_0 : i32, i32
  }
  func.func @transform_2(%arg0: i32) -> (i32, i32) {
    %c0_i32 = arith.constant 0 : i32
    %c0_i32_0 = arith.constant 0 : i32
    %c0_i32_1 = arith.constant 0 : i32
    return %c0_i32, %c0_i32_0 : i32, i32
  }
  func.func @transform_3(%arg0: i32) -> (i32, i32) {
    %c0_i32 = arith.constant 0 : i32
    %c0_i32_0 = arith.constant 0 : i32
    %c0_i32_1 = arith.constant 0 : i32
    return %c0_i32, %c0_i32_0 : i32, i32
  }
  func.func @transform_4(%arg0: i32) -> (i32, i32) {
    %c0_i32 = arith.constant 0 : i32
    %c0_i32_0 = arith.constant 0 : i32
    %c0_i32_1 = arith.constant 0 : i32
    return %c0_i32, %c0_i32_0 : i32, i32
  }
  func.func @transform_5(%arg0: i32) -> (i32, i32) {
    %c0_i32 = arith.constant 0 : i32
    %c0_i32_0 = arith.constant 0 : i32
    return %arg0, %c0_i32 : i32, i32
  }
}

</mosaic_0001>

<llo_original>
// kernel: tpu_custom_call.1
$region0: #{tpu_custom_call.1}
  #allocation0 [shape = 'u32[]', space=smem, size = 0x4, offset = 0x4, fixed_abs, tag = 'smem constant byte address 0x4 - core index']
  #allocation1 [shape = 'u32[144,128]{1,0:T(1,128)}', space=vmem, size = 0x12000, scoped, tag = 'internal scratch']
  %s0 = inlined_call_operand.hbm [shape: f32[16,16], index: 0, kind: input, shape index: {}]
  %s1 = inlined_call_operand.hbm [shape: bf16[16,256], index: 1, kind: input, shape index: {}]
  %s2 = inlined_call_operand.vmem [shape: f32[1,256], index: 2, kind: input, shape index: {}]
  %s3 = inlined_call_operand.hbm [shape: bf16[256,128], index: 3, kind: input, shape index: {}]
  %s4 = inlined_call_operand.vmem [shape: f32[1,128], index: 4, kind: input, shape index: {}]
  %s5 = inlined_call_operand.hbm [shape: bf16[16,128], index: 5, kind: output, shape index: {}]
  %s6 = sld [smem:[#allocation0]]
  $region42: #{tpu_custom_call.1} parent=0
    _
  %s8 = ssub.s32 1, %s6
  %s9 = scalar_select 0, %s8, %s6
  $region1: #{tpu_custom_call.1} parent=0
    #allocation2 [shape = 'u8[8192]{0}', space=vmem, size = 0x2000, scoped, tag = 'input window, operand 0, single buffered']
    #allocation3 [shape = 's32[1]{0}', space=sflag, size = 0x4, scoped, tag = 'scoped memory for tpu_custom_call.1']
    #allocation4 [shape = 's32[1]{0}', space=sflag, size = 0x4, scoped, tag = 'scoped memory for tpu_custom_call.1']
    #allocation5 [shape = 'u8[8192]{0}', space=vmem, size = 0x2000, scoped, tag = 'input window, operand 1, single buffered']
    #allocation6 [shape = 's32[1]{0}', space=sflag, size = 0x4, scoped, tag = 'scoped memory for tpu_custom_call.1']
    #allocation7 [shape = 'u8[65536]{0}', space=vmem, size = 0x10000, scoped, tag = 'input window, operand 3, single buffered']
    #allocation8 [shape = 'u8[4096]{0}', space=vmem, size = 0x1000, scoped, tag = 'output window, operand 0, single buffered']
    %10 = vsyncpa [#allocation3], 0
    %11 = vsyncpa [#allocation6], 0
    %12 = vsyncpa [#allocation4], 0
    // Predicated region
    $region2: #{tpu_custom_call.1} parent=1 // pred_check
      _
    $region3: #{tpu_custom_call.1} parent=1 // pred_check_branch
      %14 = sbr.rel (0) target = $region5
    $region4: #{tpu_custom_call.1} parent=1 // pred_region
      %s16 = ssub.s32 256, 256
      %17 = vsyncadd [#allocation3], %s16
      %s18 = sshll.u32 [#allocation2], 4
      %s19 = int_to_ptr.vmem [resolvable:$true] %s18
      %24 = dma.hbm_to_vmem [thread:$0]  %s0, 256, %s19, [#allocation3], 128, 128, 8
    $region5: #{tpu_custom_call.1} parent=1 // pred_fallthru
      _
    // Predicated region
    $region6: #{tpu_custom_call.1} parent=1 // pred_check
      _
    $region7: #{tpu_custom_call.1} parent=1 // pred_check_branch
      %26 = sbr.rel (0) target = $region9
    $region8: #{tpu_custom_call.1} parent=1 // pred_region
      %s28 = ssub.s32 256, 256
      %29 = vsyncadd [#allocation6], %s28
      %s30 = sshll.u32 [#allocation5], 4
      %s31 = int_to_ptr.vmem [resolvable:$true] %s30
      %36 = dma.hbm_to_vmem [thread:$0]  %s1, 256, %s31, [#allocation6], 128, 128, 8
    $region9: #{tpu_custom_call.1} parent=1 // pred_fallthru
      _
    // Predicated region
    $region10: #{tpu_custom_call.1} parent=1 // pred_check
      _
    $region11: #{tpu_custom_call.1} parent=1 // pred_check_branch
      %38 = sbr.rel (0) target = $region13
    $region12: #{tpu_custom_call.1} parent=1 // pred_region
      _
    $region13: #{tpu_custom_call.1} parent=1 // pred_fallthru
      _
    // Predicated region
    $region14: #{tpu_custom_call.1} parent=1 // pred_check
      _
    $region15: #{tpu_custom_call.1} parent=1 // pred_check_branch
      %40 = sbr.rel (0) target = $region17
    $region16: #{tpu_custom_call.1} parent=1 // pred_region
      %s42 = ssub.s32 2048, 2048
      %43 = vsyncadd [#allocation6], %s42
      %s44 = sshll.u32 [#allocation7], 4
      %s45 = int_to_ptr.vmem [resolvable:$true] %s44
      %50 = dma.hbm_to_vmem [thread:$0]  %s3, 2048, %s45, [#allocation6], 64, 64, 4
    $region17: #{tpu_custom_call.1} parent=1 // pred_fallthru
      _
    // Predicated region
    $region18: #{tpu_custom_call.1} parent=1 // pred_check
      _
    $region19: #{tpu_custom_call.1} parent=1 // pred_check_branch
      %52 = sbr.rel (0) target = $region21
    $region20: #{tpu_custom_call.1} parent=1 // pred_region
      _
    $region21: #{tpu_custom_call.1} parent=1 // pred_fallthru
      _
    // Predicated region
    $region22: #{tpu_custom_call.1} parent=1 // pred_check
      _
    $region23: #{tpu_custom_call.1} parent=1 // pred_check_branch
      %54 = sbr.rel (0) target = $region25
    $region24: #{tpu_custom_call.1} parent=1 // pred_region
      %55 = dma.done [#allocation3], 256
    $region25: #{tpu_custom_call.1} parent=1 // pred_fallthru
      _
    // Predicated region
    $region26: #{tpu_custom_call.1} parent=1 // pred_check
      _
    $region27: #{tpu_custom_call.1} parent=1 // pred_check_branch
      %57 = sbr.rel (0) target = $region29
    $region28: #{tpu_custom_call.1} parent=1 // pred_region
      %58 = dma.done [#allocation6], 256
    $region29: #{tpu_custom_call.1} parent=1 // pred_fallthru
      _
    // Predicated region
    $region30: #{tpu_custom_call.1} parent=1 // pred_check
      _
    $region31: #{tpu_custom_call.1} parent=1 // pred_check_branch
      %60 = sbr.rel (0) target = $region33
    $region32: #{tpu_custom_call.1} parent=1 // pred_region
      %61 = dma.done [#allocation6], 2048
    $region33: #{tpu_custom_call.1} parent=1 // pred_fallthru
      _
    %v63 = vld [vmem:[#allocation2] sm:$0xff]
    %v64 = vld [vmem:[#allocation2 + $0x8] sm:$0xff]
    %v65 = vpack.c.bf16 %v64, %v63
    %v66 = vld [vmem:[#allocation5] sm:$0xff]
    %v67 = vld [vmem:[#allocation5 + $0x8] sm:$0xff]
    %v68 = vld [vmem:[%s2] sm:$0x3]
    %v70 = vlaneseq
    %v71 = vshrl.u32 %v70, 7
    %v72 = vsub.s32 0, %v71
    %v73 = vrot.slane %v68, %v72
    %v74 = vlaneseq
    %v75 = vshrl.u32 %v74, 7
    %v76 = vsub.s32 1, %v75
    %v77 = vrot.slane %v68, %v76
    %v82 = vunpack.c.l.b16 %v66
    %v83 = vunpack.c.h.b16 %v66
    %v84 = vunpack.c.l.b16 %v67
    %v85 = vunpack.c.h.b16 %v67
    %v86 = vpack.c.b16 %v84, %v82
    %v87 = vpack.c.b16 %v85, %v83
    %vm90 = vcmask 130048
    %v92 = vsel %vm90, %v65, 0
    %94 = vmatprep.subr.bf16.mxu0 0
    %95 = vmatpush1.bf16.msra.mxu0 0
    %96 = vmatprep.subr.bf16.mxu0 0
    %97 = vmatpush1.bf16.msra.mxu0 0
    %98 = vmatprep.subr.bf16.mxu0 0
    %99 = vmatpush1.bf16.msra.mxu0 0
    %100 = vmatprep.subr.bf16.mxu0 0
    %101 = vmatpush1.bf16.msra.mxu0 0
    %102 = vmatprep.subr.bf16.mxu0 0
    %103 = vmatpush1.bf16.msra.mxu0 0
    %104 = vmatprep.subr.bf16.mxu0 0
    %105 = vmatpush1.bf16.msra.mxu0 0
    %106 = vmatprep.subr.bf16.mxu0 0
    %107 = vmatpush1.bf16.msra.mxu0 0
    %108 = vmatprep.subr.bf16.mxu0 %v87
    %109 = vmatpush1.bf16.msra.mxu0 %v86
    %110 = vmatprep.subr.bf16.mxu0 0
    %111 = vmatpush2.bf16.msra.mxu0 0
    %112 = vmatprep.subr.bf16.mxu0 0
    %113 = vmatpush2.bf16.msra.mxu0 0
    %114 = vmatprep.subr.bf16.mxu0 0
    %115 = vmatpush2.bf16.msra.mxu0 0
    %116 = vmatprep.subr.bf16.mxu0 0
    %117 = vmatpush2.bf16.msra.mxu0 0
    %118 = vmatprep.subr.bf16.mxu0 0
    %119 = vmatpush2.bf16.msra.mxu0 0
    %120 = vmatprep.subr.bf16.mxu0 0
    %121 = vmatpush2.bf16.msra.mxu0 0
    %122 = vmatprep.subr.bf16.mxu0 0
    %123 = vmatpush2.bf16.msra.mxu0 0
    %124 = vmatprep.subr.bf16.mxu0 0
    %125 = vmatpush2.bf16.msra.mxu0 0
    %126 = vmatprep.mubr.bf16.mxu0 0
    %127 = vmatmul.mubr.bf16.gmra.mxu0 %v92
    %v128 = vpop.f32.mrf.mxu0
    %v129 = vadd.f32 %v73, %v128
    %v130 = vpop.f32.mrf.mxu0
    %v131 = vadd.f32 %v77, %v130
    %v132 = vpop.f32.mrf.mxu0
    %v133 = vadd.f32 %v73, %v132
    %v134 = vpop.f32.mrf.mxu0
    %v135 = vadd.f32 %v77, %v134
    %136 = vdwg.mxu0
    %v137 = vmax.f32 %v129, 0.0
    %v138 = vmax.f32 %v131, 0.0
    %v139 = vmax.f32 %v133, 0.0
    %v140 = vmax.f32 %v135, 0.0
    %v141 = vpack.c.bf16 %v139, %v137
    %v142 = vpack.c.bf16 %v140, %v138
    %v143 = vld [vmem:[#allocation7] sm:$0xf]
    %v144 = vld [vmem:[#allocation7 + $0x4] sm:$0xf]
    %v145 = vld [vmem:[#allocation7 + $0x8] sm:$0xf]
    %v146 = vld [vmem:[#allocation7 + $0xc] sm:$0xf]
    %v147 = vld [vmem:[#allocation7 + $0x10] sm:$0xf]
    %v148 = vld [vmem:[#allocation7 + $0x14] sm:$0xf]
    %v149 = vld [vmem:[#allocation7 + $0x18] sm:$0xf]
    %v150 = vld [vmem:[#allocation7 + $0x1c] sm:$0xf]
    %v151 = vld [vmem:[#allocation7 + $0x20] sm:$0xf]
    %v152 = vld [vmem:[#allocation7 + $0x24] sm:$0xf]
    %v153 = vld [vmem:[#allocation7 + $0x28] sm:$0xf]
    %v154 = vld [vmem:[#allocation7 + $0x2c] sm:$0xf]
    %v155 = vld [vmem:[#allocation7 + $0x30] sm:$0xf]
    %v156 = vld [vmem:[#allocation7 + $0x34] sm:$0xf]
    %v157 = vld [vmem:[#allocation7 + $0x38] sm:$0xf]
    %v158 = vld [vmem:[#allocation7 + $0x3c] sm:$0xf]
    %v159 = vld [vmem:[#allocation7 + $0x40] sm:$0xf]
    %v160 = vld [vmem:[#allocation7 + $0x44] sm:$0xf]
    %v161 = vld [vmem:[#allocation7 + $0x48] sm:$0xf]
    %v162 = vld [vmem:[#allocation7 + $0x4c] sm:$0xf]
    %v163 = vld [vmem:[#allocation7 + $0x50] sm:$0xf]
    %v164 = vld [vmem:[#allocation7 + $0x54] sm:$0xf]
    %v165 = vld [vmem:[#allocation7 + $0x58] sm:$0xf]
    %v166 = vld [vmem:[#allocation7 + $0x5c] sm:$0xf]
    %v167 = vld [vmem:[#allocation7 + $0x60] sm:$0xf]
    %v168 = vld [vmem:[#allocation7 + $0x64] sm:$0xf]
    %v169 = vld [vmem:[#allocation7 + $0x68] sm:$0xf]
    %v170 = vld [vmem:[#allocation7 + $0x6c] sm:$0xf]
    %v171 = vld [vmem:[#allocation7 + $0x70] sm:$0xf]
    %v172 = vld [vmem:[#allocation7 + $0x74] sm:$0xf]
    %v173 = vld [vmem:[#allocation7 + $0x78] sm:$0xf]
    %v174 = vld [vmem:[#allocation7 + $0x7c] sm:$0xf]
    %v175 = vld [vmem:[%s4] sm:$0x1]
    %v177 = vlaneseq
    %v178 = vshrl.u32 %v177, 7
    %v179 = vsub.s32 0, %v178
    %v180 = vrot.slane %v175, %v179
    %v214 = vunpack.c.l.b16 %v143
    %v215 = vunpack.c.l.b16 %v144
    %v216 = vunpack.c.l.b16 %v145
    %v217 = vunpack.c.l.b16 %v146
    %v218 = vunpack.c.l.b16 %v147
    %v219 = vunpack.c.l.b16 %v148
    %v220 = vunpack.c.l.b16 %v149
    %v221 = vunpack.c.l.b16 %v150
    %v222 = vunpack.c.l.b16 %v151
    %v223 = vunpack.c.l.b16 %v152
    %v224 = vunpack.c.l.b16 %v153
    %v225 = vunpack.c.l.b16 %v154
    %v226 = vunpack.c.l.b16 %v155
    %v227 = vunpack.c.l.b16 %v156
    %v228 = vunpack.c.l.b16 %v157
    %v229 = vunpack.c.l.b16 %v158
    %v230 = vunpack.c.l.b16 %v159
    %v231 = vunpack.c.l.b16 %v160
    %v232 = vunpack.c.l.b16 %v161
    %v233 = vunpack.c.l.b16 %v162
    %v234 = vunpack.c.l.b16 %v163
    %v235 = vunpack.c.l.b16 %v164
    %v236 = vunpack.c.l.b16 %v165
    %v237 = vunpack.c.l.b16 %v166
    %v238 = vunpack.c.l.b16 %v167
    %v239 = vunpack.c.l.b16 %v168
    %v240 = vunpack.c.l.b16 %v169
    %v241 = vunpack.c.l.b16 %v170
    %v242 = vunpack.c.l.b16 %v171
    %v243 = vunpack.c.l.b16 %v172
    %v244 = vunpack.c.l.b16 %v173
    %v245 = vunpack.c.l.b16 %v174
    %v246 = vpack.c.b16 %v215, %v214
    %v247 = vpack.c.b16 %v217, %v216
    %v248 = vpack.c.b16 %v219, %v218
    %v249 = vpack.c.b16 %v221, %v220
    %v250 = vpack.c.b16 %v223, %v222
    %v251 = vpack.c.b16 %v225, %v224
    %v252 = vpack.c.b16 %v227, %v226
    %v253 = vpack.c.b16 %v229, %v228
    %v254 = vpack.c.b16 %v231, %v230
    %v255 = vpack.c.b16 %v233, %v232
    %v256 = vpack.c.b16 %v235, %v234
    %v257 = vpack.c.b16 %v237, %v236
    %v258 = vpack.c.b16 %v239, %v238
    %v259 = vpack.c.b16 %v241, %v240
    %v260 = vpack.c.b16 %v243, %v242
    %v261 = vpack.c.b16 %v245, %v244
    %278 = vmatprep.subr.bf16.mxu0 0
    %279 = vmatpush1.bf16.msra.mxu0 %v253
    %280 = vmatprep.subr.bf16.mxu0 0
    %281 = vmatpush1.bf16.msra.mxu0 %v252
    %282 = vmatprep.subr.bf16.mxu0 0
    %283 = vmatpush1.bf16.msra.mxu0 %v251
    %284 = vmatprep.subr.bf16.mxu0 0
    %285 = vmatpush1.bf16.msra.mxu0 %v250
    %286 = vmatprep.subr.bf16.mxu0 0
    %287 = vmatpush1.bf16.msra.mxu0 %v249
    %288 = vmatprep.subr.bf16.mxu0 0
    %289 = vmatpush1.bf16.msra.mxu0 %v248
    %290 = vmatprep.subr.bf16.mxu0 0
    %291 = vmatpush1.bf16.msra.mxu0 %v247
    %292 = vmatprep.subr.bf16.mxu0 0
    %293 = vmatpush1.bf16.msra.mxu0 %v246
    %294 = vmatprep.subr.bf16.mxu0 0
    %295 = vmatpush2.bf16.msra.mxu0 %v261
    %296 = vmatprep.subr.bf16.mxu0 0
    %297 = vmatpush2.bf16.msra.mxu0 %v260
    %298 = vmatprep.subr.bf16.mxu0 0
    %299 = vmatpush2.bf16.msra.mxu0 %v259
    %300 = vmatprep.subr.bf16.mxu0 0
    %301 = vmatpush2.bf16.msra.mxu0 %v258
    %302 = vmatprep.subr.bf16.mxu0 0
    %303 = vmatpush2.bf16.msra.mxu0 %v257
    %304 = vmatprep.subr.bf16.mxu0 0
    %305 = vmatpush2.bf16.msra.mxu0 %v256
    %306 = vmatprep.subr.bf16.mxu0 0
    %307 = vmatpush2.bf16.msra.mxu0 %v255
    %308 = vmatprep.subr.bf16.mxu0 0
    %309 = vmatpush2.bf16.msra.mxu0 %v254
    %310 = vmatprep.mubr.bf16.mxu0 %v142
    %311 = vmatmul.mubr.bf16.gmra.mxu0 %v141
    %v312 = vpop.f32.mrf.mxu0
    %v313 = vadd.f32 %v180, %v312
    %v314 = vpop.f32.mrf.mxu0
    %v315 = vpop.f32.mrf.mxu0
    %v316 = vadd.f32 %v180, %v315
    %v317 = vpop.f32.mrf.mxu0
    %318 = vdwg.mxu0
    %v319 = vlaneseq
    %v320 = vand.u32 %v319, 127
    %vm321 = vcmp.lt.s32.totalorder %v320, 8
    %v322 = vsel %vm321, %v313, -1e+30
    %v323 = vsel %vm321, %v316, -1e+30
    %324 = vmax.xlane.f32.xlu0 %v322
    %v325 = vpop.xlane.xlu0 %324
    %326 = vmax.xlane.f32.xlu0 %v323
    %v327 = vpop.xlane.xlu0 %326
    %v328 = vsub.f32 %v313, %v325
    %v329 = vsub.f32 %v316, %v327
    %v330 = vmul.f32 %v328, 1.442695
    %v331 = vpow.pop %v330
    %v332 = vmul.f32 %v329, 1.442695
    %v333 = vpow.pop %v332
    %v334 = vsel %vm321, %v331, 0.0
    %v335 = vsel %vm321, %v333, 0.0
    %336 = vadd.xlane.f32.xlu0 %v334
    %v337 = vpop.xlane.xlu0 %336
    %338 = vadd.xlane.f32.xlu0 %v335
    %v339 = vpop.xlane.xlu0 %338
    %v340 = vrcp.pop %v337
    %v341 = vmul.f32 %v334, %v340
    %v342 = vrcp.pop %v339
    %v343 = vmul.f32 %v335, %v342
    %vm344 = vcmp.eq.s32.totalorder %v320, 8
    %v345 = vsel %vm344, %v313, %v341
    %v346 = vsel %vm344, %v316, %v343
    %v347 = vpack.c.bf16 %v346, %v345
    %v349 = vunpack.c.l.b16 %v347
    %v350 = vunpack.c.h.b16 %v347
    %v351 = vpack.c.b16 %v349, %v349
    %v352 = vpack.c.b16 %v350, %v350
    %355 = vst [vmem:[#allocation8] sm:$0xf] %v351
    %356 = vst [vmem:[#allocation8 + $0x4] sm:$0xf] %v352
    // Predicated region
    $region34: #{tpu_custom_call.1} parent=1 // pred_check
      _
    $region35: #{tpu_custom_call.1} parent=1 // pred_check_branch
      %358 = sbr.rel (0) target = $region37
    $region36: #{tpu_custom_call.1} parent=1 // pred_region
      %s360 = ssub.s32 128, 128
      %361 = vsyncadd [#allocation4], %s360
      %s362 = sshll.u32 [#allocation8], 4
      %s363 = int_to_ptr.vmem [resolvable:$true] %s362
      %368 = dma.vmem_to_hbm [thread:$0]  %s363, 128, %s5, [#allocation4], 64, 64, 4
    $region37: #{tpu_custom_call.1} parent=1 // pred_fallthru
      _
    // Predicated region
    $region38: #{tpu_custom_call.1} parent=1 // pred_check
      _
    $region39: #{tpu_custom_call.1} parent=1 // pred_check_branch
      %370 = sbr.rel (0) target = $region41
    $region40: #{tpu_custom_call.1} parent=1 // pred_region
      %371 = dma.done [#allocation4], 128
    $region41: #{tpu_custom_call.1} parent=1 // pred_fallthru
      _
    %372 = vsyncpa [#allocation3], 1
    %373 = vsyncpa [#allocation6], 1
    %374 = vsyncpa [#allocation4], 1

</llo_original>
